<compile_context>
chip_gen: v7x
topology: tpu7x:2x2x1
jax: 0.10.0
libtpu: 0.0.40
codegen_flags: <defaults>
</compile_context>

<pallas_src>
import jax
import jax.numpy as jnp
from jax.experimental import pallas as pl
from jax.experimental.pallas import tpu as pltpu


def _residual_kernel(x_ref, w_ref, b_ref, o_ref):
    """o[r, :] = sum_s w[r, s] * x[s, :] + b[r]   (residual already folded in).

    x_ref / o_ref : (GC, TL) activation tile (lane axis = spatial, lane-dense)
    w_ref         : (GC, GC) f32 folded, batch-group-expanded weights
    b_ref         : (GC, 1)  f32 folded bias
    """
    x = x_ref[...].astype(jnp.float32)          # (GC, TL); f32 accum even for bf16 I/O
    w = w_ref[...]                               # (GC, GC)
    gc = x.shape[0]
    # Dense VPU formulation: every term is a full (GC, TL) FMA (all sublanes
    # busy), no per-row assembly, single dense store.
    acc = x[0:1, :] * w[:, 0:1]                  # (1,TL) * (GC,1) -> (GC,TL)
    for s in range(1, gc):
        acc = acc + x[s:s + 1, :] * w[:, s:s + 1]
    acc = acc + b_ref[...]                       # (GC,1) broadcast over lanes
    o_ref[...] = acc.astype(o_ref.dtype)


def residual_connection(x_nchw, w, b, half_step: float = 0.5, *,
                        max_block_bytes: int = 4 << 20):
    """Fused ResidualConnection with a pointwise-linear inner module.

    x_nchw: (N, C, H, W)
    w:      (C, C)  inner-module weight (channels-in x channels-out)
    b:      (C,)    inner-module bias
    """
    N, C, H, W = x_nchw.shape
    HW = H * W
    dtype = x_nchw.dtype
    itemsize = jnp.dtype(dtype).itemsize

    # ---- Fold residual identity + half_step into the tiny weights (host side).
    w_eff = jnp.eye(C, dtype=jnp.float32) + half_step * w.astype(jnp.float32)  # (Cin,Cout)
    b_eff = half_step * b.astype(jnp.float32)                                   # (Cout,)

    # ---- Pack G batch members onto the sublane axis so blocks fill whole vregs
    # (8 sublanes for f32, 16 for bf16).  Pure contiguous reshape, no transpose.
    packing = 32 // itemsize
    G = 1
    for cand in range(1, N + 1):
        if N % cand == 0 and (cand * C) % packing == 0 and cand * C <= 256:
            G = cand
            break
    GC = G * C
    NG = N // G
    x3 = x_nchw.reshape(NG, GC, HW)

    # Block-diagonal, transposed, group-expanded weights:
    #   o[g*C + r, :] = sum_s w_exp[g*C + r, g*C + s] * x[g*C + s, :] + b_exp[g*C + r]
    w_exp = jnp.kron(jnp.eye(G, dtype=jnp.float32), w_eff.T)   # (GC, GC)
    b_exp = jnp.tile(b_eff, G).reshape(GC, 1)                   # (GC, 1)

    # ---- Lane-axis tile: ~max_block_bytes per block buffer (multiple of 128),
    # big enough to amortize the ~0.35us/step overhead, small enough that
    # double-buffered in+out stays well under every generation's scoped VMEM.
    max_tl = max(128, (max_block_bytes // (GC * itemsize)) // 128 * 128)
    tl = HW if HW <= max_tl else max_tl
    n_lane = -(-HW // tl)                       # cdiv; edge block is masked

    # v7x has two TensorCores: keep at least 2 steps on a "parallel" axis.
    if NG * n_lane < 2 and HW >= 256:
        tl = max(128, ((HW + 1) // 2 + 127) // 128 * 128)
        n_lane = -(-HW // tl)

    grid = (NG, n_lane)

    out3 = pl.pallas_call(
        _residual_kernel,
        out_shape=jax.ShapeDtypeStruct((NG, GC, HW), dtype),
        grid=grid,
        in_specs=[
            pl.BlockSpec((None, GC, tl), lambda n, l: (n, 0, l)),   # x tile (VMEM)
            pl.BlockSpec((GC, GC), lambda n, l: (0, 0)),            # folded W
            pl.BlockSpec((GC, 1), lambda n, l: (0, 0)),             # folded b
        ],
        out_specs=pl.BlockSpec((None, GC, tl), lambda n, l: (n, 0, l)),
        compiler_params=pltpu.CompilerParams(
            dimension_semantics=("parallel", "parallel"),
            vmem_limit_bytes=48 << 20,
        ),
    )(x3, w_exp, b_exp)

    # (NG, GC, HW) -> NCHW: free, contiguous reshape.
    return out3.reshape(N, C, H, W)


def _reference(x_nchw, w, b, half_step):
    """Pure-JAX reference matching the PyTorch semantics."""
    N, C, H, W = x_nchw.shape
    x2d = jnp.transpose(x_nchw, (0, 2, 3, 1)).reshape(N * H * W, C)
    mod = x2d @ w + b
    out = x2d + half_step * mod
    return jnp.transpose(out.reshape(N, H, W, C), (0, 3, 1, 2))


if __name__ == "__main__":
    key = jax.random.PRNGKey(0)
    kx, kw, kb = jax.random.split(key, 3)

    N, C, H, W = 2, 4, 16, 16
    x = jax.random.normal(kx, (N, C, H, W), dtype=jnp.float32)

    # Deterministic inner-module parameters (synthetic, not a checkpoint).
    w = jax.random.normal(kw, (C, C), dtype=jnp.float32) * 0.1
    b = jax.random.normal(kb, (C,), dtype=jnp.float32) * 0.1

    half_step = 0.5
    out = jax.block_until_ready(residual_connection(x, w, b, half_step=half_step))

    ref = _reference(x, w, b, half_step)
    assert out.shape == x.shape and out.dtype == x.dtype
    assert jnp.allclose(out, ref, atol=1e-5, rtol=1e-5), "mismatch vs reference"

    print("KERNEL_OK")
</pallas_src>

<mosaic_0001>
module attributes {stable_mosaic.version = 11 : i64} {
  func.func @_residual_kernel(%arg0: i32, %arg1: i32, %arg2: memref<1x8x128xf32, #tpu.memory_space<vmem>>, %arg3: memref<8x8xf32, #tpu.memory_space<vmem>>, %arg4: memref<8x1xf32, #tpu.memory_space<vmem>>, %arg5: memref<1x8x128xf32, #tpu.memory_space<vmem>>) attributes {dimension_semantics = [#tpu.dimension_semantics<parallel>, #tpu.dimension_semantics<parallel>], iteration_bounds = array<i64: 1, 2>, scalar_prefetch = 0 : i64, scratch_operands = 0 : i64, tpu.core_type = #tpu.core_type<tc>, window_params = [{transform_indices = @transform_0, window_bounds = array<i64: 1, 8, 128>}, {pipeline_mode = #tpu.pipeline_mode<synchronous>, transform_indices = @transform_1, window_bounds = array<i64: 8, 8>}, {pipeline_mode = #tpu.pipeline_mode<synchronous>, transform_indices = @transform_2, window_bounds = array<i64: 8, 1>}, {transform_indices = @transform_3, window_bounds = array<i64: 1, 8, 128>}]} {
    %c0 = arith.constant 0 : index
    %c0_0 = arith.constant 0 : index
    %c0_1 = arith.constant 0 : index
    %0 = vector.load %arg2[%c0, %c0_0, %c0_1] : memref<1x8x128xf32, #tpu.memory_space<vmem>>, vector<1x8x128xf32>
    %1 = vector.shape_cast %0 : vector<1x8x128xf32> to vector<8x128xf32>
    %c0_2 = arith.constant 0 : index
    %c0_3 = arith.constant 0 : index
    %2 = vector.load %arg3[%c0_2, %c0_3] : memref<8x8xf32, #tpu.memory_space<vmem>>, vector<8x8xf32>
    %3 = vector.extract_strided_slice %1 {offsets = [0, 0], sizes = [1, 128], strides = [1, 1]} : vector<8x128xf32> to vector<1x128xf32>
    %4 = vector.extract_strided_slice %2 {offsets = [0, 0], sizes = [8, 1], strides = [1, 1]} : vector<8x8xf32> to vector<8x1xf32>
    %5 = vector.broadcast %3 : vector<1x128xf32> to vector<8x128xf32>
    %6 = vector.broadcast %4 : vector<8x1xf32> to vector<8x128xf32>
    %7 = arith.mulf %5, %6 : vector<8x128xf32>
    %8 = vector.extract_strided_slice %1 {offsets = [1, 0], sizes = [1, 128], strides = [1, 1]} : vector<8x128xf32> to vector<1x128xf32>
    %9 = vector.extract_strided_slice %2 {offsets = [0, 1], sizes = [8, 1], strides = [1, 1]} : vector<8x8xf32> to vector<8x1xf32>
    %10 = vector.broadcast %8 : vector<1x128xf32> to vector<8x128xf32>
    %11 = vector.broadcast %9 : vector<8x1xf32> to vector<8x128xf32>
    %12 = arith.mulf %10, %11 : vector<8x128xf32>
    %13 = arith.addf %7, %12 : vector<8x128xf32>
    %14 = vector.extract_strided_slice %1 {offsets = [2, 0], sizes = [1, 128], strides = [1, 1]} : vector<8x128xf32> to vector<1x128xf32>
    %15 = vector.extract_strided_slice %2 {offsets = [0, 2], sizes = [8, 1], strides = [1, 1]} : vector<8x8xf32> to vector<8x1xf32>
    %16 = vector.broadcast %14 : vector<1x128xf32> to vector<8x128xf32>
    %17 = vector.broadcast %15 : vector<8x1xf32> to vector<8x128xf32>
    %18 = arith.mulf %16, %17 : vector<8x128xf32>
    %19 = arith.addf %13, %18 : vector<8x128xf32>
    %20 = vector.extract_strided_slice %1 {offsets = [3, 0], sizes = [1, 128], strides = [1, 1]} : vector<8x128xf32> to vector<1x128xf32>
    %21 = vector.extract_strided_slice %2 {offsets = [0, 3], sizes = [8, 1], strides = [1, 1]} : vector<8x8xf32> to vector<8x1xf32>
    %22 = vector.broadcast %20 : vector<1x128xf32> to vector<8x128xf32>
    %23 = vector.broadcast %21 : vector<8x1xf32> to vector<8x128xf32>
    %24 = arith.mulf %22, %23 : vector<8x128xf32>
    %25 = arith.addf %19, %24 : vector<8x128xf32>
    %26 = vector.extract_strided_slice %1 {offsets = [4, 0], sizes = [1, 128], strides = [1, 1]} : vector<8x128xf32> to vector<1x128xf32>
    %27 = vector.extract_strided_slice %2 {offsets = [0, 4], sizes = [8, 1], strides = [1, 1]} : vector<8x8xf32> to vector<8x1xf32>
    %28 = vector.broadcast %26 : vector<1x128xf32> to vector<8x128xf32>
    %29 = vector.broadcast %27 : vector<8x1xf32> to vector<8x128xf32>
    %30 = arith.mulf %28, %29 : vector<8x128xf32>
    %31 = arith.addf %25, %30 : vector<8x128xf32>
    %32 = vector.extract_strided_slice %1 {offsets = [5, 0], sizes = [1, 128], strides = [1, 1]} : vector<8x128xf32> to vector<1x128xf32>
    %33 = vector.extract_strided_slice %2 {offsets = [0, 5], sizes = [8, 1], strides = [1, 1]} : vector<8x8xf32> to vector<8x1xf32>
    %34 = vector.broadcast %32 : vector<1x128xf32> to vector<8x128xf32>
    %35 = vector.broadcast %33 : vector<8x1xf32> to vector<8x128xf32>
    %36 = arith.mulf %34, %35 : vector<8x128xf32>
    %37 = arith.addf %31, %36 : vector<8x128xf32>
    %38 = vector.extract_strided_slice %1 {offsets = [6, 0], sizes = [1, 128], strides = [1, 1]} : vector<8x128xf32> to vector<1x128xf32>
    %39 = vector.extract_strided_slice %2 {offsets = [0, 6], sizes = [8, 1], strides = [1, 1]} : vector<8x8xf32> to vector<8x1xf32>
    %40 = vector.broadcast %38 : vector<1x128xf32> to vector<8x128xf32>
    %41 = vector.broadcast %39 : vector<8x1xf32> to vector<8x128xf32>
    %42 = arith.mulf %40, %41 : vector<8x128xf32>
    %43 = arith.addf %37, %42 : vector<8x128xf32>
    %44 = vector.extract_strided_slice %1 {offsets = [7, 0], sizes = [1, 128], strides = [1, 1]} : vector<8x128xf32> to vector<1x128xf32>
    %45 = vector.extract_strided_slice %2 {offsets = [0, 7], sizes = [8, 1], strides = [1, 1]} : vector<8x8xf32> to vector<8x1xf32>
    %46 = vector.broadcast %44 : vector<1x128xf32> to vector<8x128xf32>
    %47 = vector.broadcast %45 : vector<8x1xf32> to vector<8x128xf32>
    %48 = arith.mulf %46, %47 : vector<8x128xf32>
    %49 = arith.addf %43, %48 : vector<8x128xf32>
    %c0_4 = arith.constant 0 : index
    %c0_5 = arith.constant 0 : index
    %50 = vector.load %arg4[%c0_4, %c0_5] : memref<8x1xf32, #tpu.memory_space<vmem>>, vector<8x1xf32>
    %51 = vector.broadcast %50 : vector<8x1xf32> to vector<8x128xf32>
    %52 = arith.addf %49, %51 : vector<8x128xf32>
    %c0_6 = arith.constant 0 : index
    %c0_7 = arith.constant 0 : index
    %c0_8 = arith.constant 0 : index
    %53 = vector.load %arg5[%c0_6, %c0_7, %c0_8] : memref<1x8x128xf32, #tpu.memory_space<vmem>>, vector<1x8x128xf32>
    %54 = vector.shape_cast %53 : vector<1x8x128xf32> to vector<8x128xf32>
    %55 = vector.shape_cast %52 : vector<8x128xf32> to vector<1x8x128xf32>
    tpu.vector_store %arg5[%c0_6, %c0_7, %c0_8], %55 {strides = array<i32>} : memref<1x8x128xf32, #tpu.memory_space<vmem>>, vector<1x8x128xf32>,
    return
  }
  func.func @transform_0(%arg0: i32, %arg1: i32) -> (i32, i32, i32) {
    %c0_i32 = arith.constant 0 : i32
    %c0_i32_0 = arith.constant 0 : i32
    return %arg0, %c0_i32, %arg1 : i32, i32, i32
  }
  func.func @transform_1(%arg0: i32, %arg1: i32) -> (i32, i32) {
    %c0_i32 = arith.constant 0 : i32
    %c0_i32_0 = arith.constant 0 : i32
    %c0_i32_1 = arith.constant 0 : i32
    return %c0_i32, %c0_i32_0 : i32, i32
  }
  func.func @transform_2(%arg0: i32, %arg1: i32) -> (i32, i32) {
    %c0_i32 = arith.constant 0 : i32
    %c0_i32_0 = arith.constant 0 : i32
    %c0_i32_1 = arith.constant 0 : i32
    return %c0_i32, %c0_i32_0 : i32, i32
  }
  func.func @transform_3(%arg0: i32, %arg1: i32) -> (i32, i32, i32) {
    %c0_i32 = arith.constant 0 : i32
    %c0_i32_0 = arith.constant 0 : i32
    return %arg0, %c0_i32, %arg1 : i32, i32, i32
  }
}

</mosaic_0001>

<llo_original>
// kernel: tpu_custom_call.1
$region0: #{tpu_custom_call.1}
  #allocation0 [shape = 'u32[]', space=smem, size = 0x4, offset = 0x4, fixed_abs, tag = 'smem constant byte address 0x4 - core index']
  #allocation1 [shape = 'u32[144,128]{1,0:T(1,128)}', space=vmem, size = 0x12000, scoped, tag = 'internal scratch']
  %s0 = inlined_call_operand.hbm [shape: f32[1,8,256], index: 0, kind: input, shape index: {}]
  %s1 = inlined_call_operand.vmem [shape: f32[8,8], index: 1, kind: input, shape index: {}]
  %s2 = inlined_call_operand.vmem [shape: f32[8,1], index: 2, kind: input, shape index: {}]
  %s3 = inlined_call_operand.hbm [shape: f32[1,8,256], index: 3, kind: output, shape index: {}]
  %s4 = sld [smem:[#allocation0]]
  $region49: #{tpu_custom_call.1} parent=0
    _
  %s6 = ssub.s32 1, %s4
  %s7 = scalar_select 0, %s6, %s4
  $region1: #{tpu_custom_call.1} parent=0
    #allocation2 [shape = 'u8[8192]{0}', space=vmem, size = 0x2000, scoped, tag = 'input window, operand 0']
    #allocation3 [shape = 's32[2]{0}', space=sflag, size = 0x8, scoped, tag = 'scoped memory for tpu_custom_call.1']
    #allocation4 [shape = 's32[2]{0}', space=sflag, size = 0x8, scoped, tag = 'scoped memory for tpu_custom_call.1']
    #allocation5 [shape = 'u8[8192]{0}', space=vmem, size = 0x2000, scoped, tag = 'output window, operand 0']
    %8 = vsyncpa [#allocation3], 0
    %s9 = scalar_lea.sflag [#allocation3], 1
    %10 = vsyncpa %s9, 0
    %11 = vsyncpa [#allocation4], 0
    %s12 = scalar_lea.sflag [#allocation4], 1
    %13 = vsyncpa %s12, 0
    loop: start=0, step=1, limit=4
    $region2: #{tpu_custom_call.1} parent=1 // loop_pre_header
      _
    $region3: #{tpu_custom_call.1} parent=1 // loop_header
      %s15 = sphi 0, %s19
      %p16 = scmp.ge.s32.totalorder %s15, 4
      %s22 = sphi 0, %s34
      %s23 = sphi 0, %s30
      %s24 = sphi 0, %s22
      %s25 = sphi 0, %s23
      %s26 = sphi 0, %s24
      %s27 = sphi 0, %s25
      %s39 = sphi 0, %s41
      %s42 = sphi 0, %s39
      %s43 = sphi 0, %s42
      %s59 = sphi 0, %s43
      %s63 = sphi 0, %s63
      %s65 = sphi 0, %s63
      %s66 = sphi 0, %s65
      %s80 = sphi 0, %s66
      %s84 = sphi 0, %s84
      %s86 = sphi 0, %s84
      %s87 = sphi 0, %s86
      %s101 = sphi 0, %s87
      %s109 = sphi 0, %s111
      %s112 = sphi 0, %s109
      %s113 = sphi 0, %s112
      %s129 = sphi 0, %s113
    $region4: #{tpu_custom_call.1} parent=1 // loop_header_branch
      %18 = sbr.rel (%p16) target = $region8
    $region5: #{tpu_custom_call.1} parent=1 // loop_body
      %s20 = ssub.s32 %s15, 1
      %s21 = ssub.s32 %s15, 2
      %s28 = sadd.s32 1, %s23
      %p29 = scmp.ge.s32.totalorder %s28, 2
      %s30 = scalar_select %p29, 0, %s28
      %s31 = sadd.s32 1, %s22
      %s32 = scalar_select %p29, %s31, %s22
      %p33 = scmp.ge.s32.totalorder %s32, 1
      %s34 = scalar_select %p33, 0, %s32
      %s35 = ssub.s32 %s22, %s34
      %s36 = ssub.s32 %s23, %s30
      %s37 = sor.u32 %s35, %s36
      %p38 = scmp.eq.s32.totalorder %s37, 0
      %s40 = sadd.s32 %s39, 1
      %s41 = scalar_select %p38, %s39, %s40
      %p44 = pneg %p38
      %p45 = scmp.eq.s32.totalorder %s15, 1
      %p46 = por %p44, %p45
      %p47 = scmp.ne.s32.totalorder %s39, %s42
      %p48 = scmp.eq.s32.totalorder %s15, 0
      %p49 = por %p47, %p48
      %p50 = scmp.ne.s32.totalorder %s39, %s42
      %p51 = scmp.eq.s32.totalorder %s20, 1
      %p52 = por %p50, %p51
      %p53 = scmp.ne.s32.totalorder %s42, %s43
      %p54 = scmp.eq.s32.totalorder %s20, 0
      %p55 = por %p53, %p54
      %p56 = scmp.ne.s32.totalorder %s42, %s43
      %p57 = scmp.eq.s32.totalorder %s21, 1
      %p58 = por %p56, %p57
      %p60 = scmp.ne.s32.totalorder %s43, %s59
      %p61 = scmp.eq.s32.totalorder %s21, 0
      %p62 = por %p60, %p61
      %s64 = sadd.s32 %s63, 1
      %p67 = scmp.eq.s32.totalorder %s15, 1
      %p68 = scmp.ne.s32.totalorder %s63, %s65
      %p69 = scmp.eq.s32.totalorder %s15, 0
      %p70 = por %p68, %p69
      %p71 = scmp.ne.s32.totalorder %s63, %s65
      %p72 = scmp.eq.s32.totalorder %s20, 1
      %p73 = por %p71, %p72
      %p74 = scmp.ne.s32.totalorder %s65, %s66
      %p75 = scmp.eq.s32.totalorder %s20, 0
      %p76 = por %p74, %p75
      %p77 = scmp.ne.s32.totalorder %s65, %s66
      %p78 = scmp.eq.s32.totalorder %s21, 1
      %p79 = por %p77, %p78
      %p81 = scmp.ne.s32.totalorder %s66, %s80
      %p82 = scmp.eq.s32.totalorder %s21, 0
      %p83 = por %p81, %p82
      %s85 = sadd.s32 %s84, 1
      %p88 = scmp.eq.s32.totalorder %s15, 1
      %p89 = scmp.ne.s32.totalorder %s84, %s86
      %p90 = scmp.eq.s32.totalorder %s15, 0
      %p91 = por %p89, %p90
      %p92 = scmp.ne.s32.totalorder %s84, %s86
      %p93 = scmp.eq.s32.totalorder %s20, 1
      %p94 = por %p92, %p93
      %p95 = scmp.ne.s32.totalorder %s86, %s87
      %p96 = scmp.eq.s32.totalorder %s20, 0
      %p97 = por %p95, %p96
      %p98 = scmp.ne.s32.totalorder %s86, %s87
      %p99 = scmp.eq.s32.totalorder %s21, 1
      %p100 = por %p98, %p99
      %p102 = scmp.ne.s32.totalorder %s87, %s101
      %p103 = scmp.eq.s32.totalorder %s21, 0
      %p104 = por %p102, %p103
      %s105 = ssub.s32 %s22, %s34
      %s106 = ssub.s32 %s23, %s30
      %s107 = sor.u32 %s105, %s106
      %p108 = scmp.eq.s32.totalorder %s107, 0
      %s110 = sadd.s32 %s109, 1
      %s111 = scalar_select %p108, %s109, %s110
      %p114 = pneg %p108
      %p115 = scmp.eq.s32.totalorder %s15, 1
      %p116 = por %p114, %p115
      %p117 = scmp.ne.s32.totalorder %s109, %s112
      %p118 = scmp.eq.s32.totalorder %s15, 0
      %p119 = por %p117, %p118
      %p120 = scmp.ne.s32.totalorder %s109, %s112
      %p121 = scmp.eq.s32.totalorder %s20, 1
      %p122 = por %p120, %p121
      %p123 = scmp.ne.s32.totalorder %s112, %s113
      %p124 = scmp.eq.s32.totalorder %s20, 0
      %p125 = por %p123, %p124
      %p126 = scmp.ne.s32.totalorder %s112, %s113
      %p127 = scmp.eq.s32.totalorder %s21, 1
      %p128 = por %p126, %p127
      %p130 = scmp.ne.s32.totalorder %s113, %s129
      %p131 = scmp.eq.s32.totalorder %s21, 0
      %p132 = por %p130, %p131
      %p133 = scmp.le.s32.totalorder 1, %s15
      %p134 = scmp.lt.s32.totalorder %s15, 3
      %p135 = pnand %p133, %p134
      %p136 = pneg %p135
      // Predicated region
      $region9: #{tpu_custom_call.1} parent=5 // pred_check
        _
      $region10: #{tpu_custom_call.1} parent=5 // pred_check_branch
        %138 = sbr.rel (%p135) target = $region12
      $region11: #{tpu_custom_call.1} parent=5 // pred_region
        %s139 = ssub.s32 %s15, 1
        // Predicated region
        $region13: #{tpu_custom_call.1} parent=11 // pred_check
          %p140 = pneg %p76
        $region14: #{tpu_custom_call.1} parent=11 // pred_check_branch
          %142 = sbr.rel (%p140) target = $region16
        $region15: #{tpu_custom_call.1} parent=11 // pred_region
          _
        $region16: #{tpu_custom_call.1} parent=11 // pred_fallthru
          _
        // Predicated region
        $region17: #{tpu_custom_call.1} parent=11 // pred_check
          %p143 = pneg %p97
        $region18: #{tpu_custom_call.1} parent=11 // pred_check_branch
          %145 = sbr.rel (%p143) target = $region20
        $region19: #{tpu_custom_call.1} parent=11 // pred_region
          _
        $region20: #{tpu_custom_call.1} parent=11 // pred_fallthru
          _
      $region12: #{tpu_custom_call.1} parent=5 // pred_fallthru
        _
      %p146 = scmp.lt.s32.totalorder %s15, 2
      // Predicated region
      $region21: #{tpu_custom_call.1} parent=5 // pred_check
        %p147 = pneg %p146
      $region22: #{tpu_custom_call.1} parent=5 // pred_check_branch
        %149 = sbr.rel (%p147) target = $region24
      $region23: #{tpu_custom_call.1} parent=5 // pred_region
        // Predicated region
        $region25: #{tpu_custom_call.1} parent=23 // pred_check
          %p150 = pneg %p49
        $region26: #{tpu_custom_call.1} parent=23 // pred_check_branch
          %152 = sbr.rel (%p150) target = $region28
        $region27: #{tpu_custom_call.1} parent=23 // pred_region
          %s153 = sand.u32 %s39, 1
          %s154 = scalar_lea.sflag [#allocation3], %s153
          %s155 = sand.u32 %s39, 1
          %s156 = smul.addr %s155, 8
          %s157 = scalar_lea.vmem [#allocation2], %s156
          %s159 = ssub.s32 128, 128
          %160 = vsyncadd %s154, %s159
          %s161 = smul.addr %s22, 2
          %s162 = sadd.s32 %s23, %s161
          %s163 = smul.addr %s162, 128
          %s164 = scalar_lea.hbm %s0, %s163
          %s166 = sshll.u32 %s157, 4
          %s167 = int_to_ptr.vmem [resolvable:$true] %s166
          %169 = dma.hbm_to_vmem [thread:$0]  %s164, 128, %s167, %s154
        $region28: #{tpu_custom_call.1} parent=23 // pred_fallthru
          _
      $region24: #{tpu_custom_call.1} parent=5 // pred_fallthru
        _
      %p170 = scmp.le.s32.totalorder 1, %s15
      %p171 = scmp.lt.s32.totalorder %s15, 3
      %p172 = pnand %p170, %p171
      %p173 = pneg %p172
      // Predicated region
      $region29: #{tpu_custom_call.1} parent=5 // pred_check
        _
      $region30: #{tpu_custom_call.1} parent=5 // pred_check_branch
        %175 = sbr.rel (%p172) target = $region32
      $region31: #{tpu_custom_call.1} parent=5 // pred_region
        %s176 = ssub.s32 %s15, 1
        %s177 = sand.u32 %s42, 1
        %s178 = scalar_lea.sflag [#allocation3], %s177
        %s179 = sand.u32 %s42, 1
        %s180 = smul.addr %s179, 8
        %s181 = scalar_lea.vmem [#allocation2], %s180
        // Predicated region
        $region33: #{tpu_custom_call.1} parent=31 // pred_check
          %p182 = pneg %p55
        $region34: #{tpu_custom_call.1} parent=31 // pred_check_branch
          %184 = sbr.rel (%p182) target = $region36
        $region35: #{tpu_custom_call.1} parent=31 // pred_region
          %185 = dma.done %s178, 128
        $region36: #{tpu_custom_call.1} parent=31 // pred_fallthru
          _
        %s186 = sand.u32 %s42, 1
        %s187 = scalar_lea.sflag [#allocation3], %s186
        %s188 = sand.u32 %s42, 1
        %s189 = smul.addr %s188, 8
        %s190 = scalar_lea.vmem [#allocation2], %s189
        %p191 = pneg %p55
        %p192 = pneg %p52
        %p193 = pneg %p76
        %p194 = pneg %p73
        %p195 = pneg %p97
        %p196 = pneg %p94
        %p197 = pneg %p125
        %p198 = pneg %p122
        %s199 = sand.u32 %s112, 1
        %s200 = scalar_lea.sflag [#allocation4], %s199
        %s201 = sand.u32 %s112, 1
        %s202 = smul.addr %s201, 8
        %s203 = scalar_lea.vmem [#allocation5], %s202
        %v204 = vld [vmem:[%s181] sm:$0xff]
        %v205 = vld [vmem:[%s1] sm:$0xff]
        %v206 = vlaneseq
        %v207 = vshrl.u32 %v206, 7
        %v208 = vsub.s32 0, %v207
        %v209 = vrot.slane %v204, %v208
        %211 = vset.pattern.permute.xlu0 0
        %212 = vperm.xlu0 %211, %v205
        %v213 = vpop.permute.xlu0 %212
        %v215 = vmul.f32 %v209, %v213
        %v216 = vlaneseq
        %v217 = vshrl.u32 %v216, 7
        %v218 = vsub.s32 1, %v217
        %v219 = vrot.slane %v204, %v218
        %220 = vset.pattern.permute.xlu0 1
        %221 = vperm.xlu0 %220, %v205
        %v222 = vpop.permute.xlu0 %221
        %v224 = vmul.f32 %v219, %v222
        %v225 = vadd.f32 %v215, %v224
        %v226 = vlaneseq
        %v227 = vshrl.u32 %v226, 7
        %v228 = vsub.s32 2, %v227
        %v229 = vrot.slane %v204, %v228
        %230 = vset.pattern.permute.xlu0 2
        %231 = vperm.xlu0 %230, %v205
        %v232 = vpop.permute.xlu0 %231
        %v234 = vmul.f32 %v229, %v232
        %v235 = vadd.f32 %v225, %v234
        %v236 = vlaneseq
        %v237 = vshrl.u32 %v236, 7
        %v238 = vsub.s32 3, %v237
        %v239 = vrot.slane %v204, %v238
        %240 = vset.pattern.permute.xlu0 3
        %241 = vperm.xlu0 %240, %v205
        %v242 = vpop.permute.xlu0 %241
        %v244 = vmul.f32 %v239, %v242
        %v245 = vadd.f32 %v235, %v244
        %v246 = vlaneseq
        %v247 = vshrl.u32 %v246, 7
        %v248 = vsub.s32 4, %v247
        %v249 = vrot.slane %v204, %v248
        %250 = vset.pattern.permute.xlu0 4
        %251 = vperm.xlu0 %250, %v205
        %v252 = vpop.permute.xlu0 %251
        %v254 = vmul.f32 %v249, %v252
        %v255 = vadd.f32 %v245, %v254
        %v256 = vlaneseq
        %v257 = vshrl.u32 %v256, 7
        %v258 = vsub.s32 5, %v257
        %v259 = vrot.slane %v204, %v258
        %260 = vset.pattern.permute.xlu0 5
        %261 = vperm.xlu0 %260, %v205
        %v262 = vpop.permute.xlu0 %261
        %v264 = vmul.f32 %v259, %v262
        %v265 = vadd.f32 %v255, %v264
        %v266 = vlaneseq
        %v267 = vshrl.u32 %v266, 7
        %v268 = vsub.s32 6, %v267
        %v269 = vrot.slane %v204, %v268
        %270 = vset.pattern.permute.xlu0 6
        %271 = vperm.xlu0 %270, %v205
        %v272 = vpop.permute.xlu0 %271
        %v274 = vmul.f32 %v269, %v272
        %v275 = vadd.f32 %v265, %v274
        %v276 = vlaneseq
        %v277 = vshrl.u32 %v276, 7
        %v278 = vsub.s32 7, %v277
        %v279 = vrot.slane %v204, %v278
        %280 = vset.pattern.permute.xlu0 7
        %281 = vperm.xlu0 %280, %v205
        %v282 = vpop.permute.xlu0 %281
        %v284 = vmul.f32 %v279, %v282
        %v285 = vadd.f32 %v275, %v284
        %v286 = vld [vmem:[%s2] sm:$0xff]
        %288 = vset.pattern.permute.xlu0 0
        %289 = vperm.xlu0 %288, %v286
        %v290 = vpop.permute.xlu0 %289
        %v292 = vadd.f32 %v285, %v290
        %293 = vst [vmem:[%s203] sm:$0xff] %v292
        %s294 = sand.u32 %s112, 1
        %s295 = scalar_lea.sflag [#allocation4], %s294
        %s296 = sand.u32 %s112, 1
        %s297 = smul.addr %s296, 8
        %s298 = scalar_lea.vmem [#allocation5], %s297
        // Predicated region
        $region37: #{tpu_custom_call.1} parent=31 // pred_check
          %p299 = pneg %p122
        $region38: #{tpu_custom_call.1} parent=31 // pred_check_branch
          %301 = sbr.rel (%p299) target = $region40
        $region39: #{tpu_custom_call.1} parent=31 // pred_region
          %s303 = ssub.s32 128, 128
          %304 = vsyncadd %s295, %s303
          %s305 = smul.addr %s24, 2
          %s306 = sadd.s32 %s25, %s305
          %s307 = smul.addr %s306, 128
          %s308 = scalar_lea.hbm %s3, %s307
          %s310 = sshll.u32 %s298, 4
          %s311 = int_to_ptr.vmem [resolvable:$true] %s310
          %313 = dma.vmem_to_hbm [thread:$0]  %s311, 128, %s308, %s295
        $region40: #{tpu_custom_call.1} parent=31 // pred_fallthru
          _
      $region32: #{tpu_custom_call.1} parent=5 // pred_fallthru
        _
      %p314 = scmp.le.s32.totalorder 2, %s15
      // Predicated region
      $region41: #{tpu_custom_call.1} parent=5 // pred_check
        %p315 = pneg %p314
      $region42: #{tpu_custom_call.1} parent=5 // pred_check_branch
        %317 = sbr.rel (%p315) target = $region44
      $region43: #{tpu_custom_call.1} parent=5 // pred_region
        %s318 = ssub.s32 %s15, 2
        // Predicated region
        $region45: #{tpu_custom_call.1} parent=43 // pred_check
          %p319 = pneg %p128
        $region46: #{tpu_custom_call.1} parent=43 // pred_check_branch
          %321 = sbr.rel (%p319) target = $region48
        $region47: #{tpu_custom_call.1} parent=43 // pred_region
          %s322 = sand.u32 %s113, 1
          %s323 = scalar_lea.sflag [#allocation4], %s322
          %s324 = sand.u32 %s113, 1
          %s325 = smul.addr %s324, 8
          %s326 = scalar_lea.vmem [#allocation5], %s325
          %327 = dma.done %s323, 128
        $region48: #{tpu_custom_call.1} parent=43 // pred_fallthru
          _
      $region44: #{tpu_custom_call.1} parent=5 // pred_fallthru
        _
    $region6: #{tpu_custom_call.1} parent=1 // loop_footer
      %s19 = sadd.s32 1, %s15
    $region7: #{tpu_custom_call.1} parent=1 // loop_footer_branch
      %14 = sbr.rel target = $region3
    $region8: #{tpu_custom_call.1} parent=1 // loop_exit
      _
    %328 = vsyncpa [#allocation3], 1
    %s329 = scalar_lea.sflag [#allocation3], 1
    %330 = vsyncpa %s329, 1
    %331 = vsyncpa [#allocation4], 1
    %s332 = scalar_lea.sflag [#allocation4], 1
    %333 = vsyncpa %s332, 1

</llo_original>
